<compile_context>
chip_gen: v5e
topology: v5e:2x2
jax: 0.10.0
libtpu: 0.0.40
codegen_flags: <defaults>
</compile_context>

<pallas_src>
import functools

import jax
import jax.numpy as jnp
from jax import lax
from jax.experimental import pallas as pl
from jax.experimental.pallas import tpu as pltpu


def _attention_kernel(len_ref, dec_ref, enc_ref,
                      wq_ref, bq_ref, wkv_ref, bkv_ref, wm_ref, bm_ref,
                      attn_ref, ctx_ref, ctx_acc,
                      *, bs, ts, nh, dim, v_dim, inv_temp):
    f32 = jnp.float32

    # ---- fused projections (+ one tanh pass each) on the MXU ----
    # proj_k and proj_v share the enc_feat operand, so their weights are
    # concatenated into a single [v_dim, nh*(dim+v_dim)] matrix: one MXU pass
    # and one EUP tanh pass over the largest operand instead of two.
    q = jnp.tanh(jnp.dot(dec_ref[...], wq_ref[...],
                         preferred_element_type=f32) + bq_ref[...])      # [bs, nh*dim]
    kv = jnp.tanh(jnp.dot(enc_ref[...], wkv_ref[...],
                          preferred_element_type=f32) + bkv_ref[...])    # [bs*ts, nh*(dim+v_dim)]
    k = kv[:, :nh * dim].reshape(bs, ts, nh * dim)                       # [bs, ts, nh*dim]
    v = kv[:, nh * dim:].reshape(bs, ts, nh * v_dim)                     # [bs, ts, nh*v_dim]

    # ---- length mask, computed once and shared by all heads ----
    t_idx = lax.broadcasted_iota(jnp.int32, (bs, ts), 1)
    mask_add = jnp.where(t_idx >= len_ref[...], -jnp.inf, 0.0)           # [bs, ts], f32

    # Dense init of the lane-padded attention output (padding lanes stay 0).
    attn_ref[...] = jnp.zeros_like(attn_ref)

    for h in range(nh):                                   # nh is tiny & static
        qh = q[:, h * dim:(h + 1) * dim]                  # [bs, dim]
        kh = k[:, :, h * dim:(h + 1) * dim]               # [bs, ts, dim]
        vh = v[:, :, h * v_dim:(h + 1) * v_dim]           # [bs, ts, v_dim]

        # Energy on the VPU (+ lane reduce): no 1-row MXU dot, no k.T,
        # batched over the whole batch.  1/temperature is a constant multiply.
        e = jnp.sum(kh * qh[:, None, :], axis=-1) * inv_temp + mask_add  # [bs, ts]

        # Softmax over T; reciprocal on the EUP (approx) + one Newton step.
        m = jnp.max(e, axis=-1, keepdims=True)
        p = jnp.exp(e - m)
        s = jnp.sum(p, axis=-1, keepdims=True)
        r = pl.reciprocal(s, approx=True)
        r = r * (2.0 - s * r)                             # refine to ~f32 accuracy
        a = p * r                                         # [bs, ts]

        # Direct slice stores -- no list append / concatenate assembly.
        attn_ref[h, :, :ts] = a
        ctx_acc[:, h * v_dim:(h + 1) * v_dim] = jnp.sum(a[:, :, None] * vh, axis=1)

    # merge_head linear (num_head > 1 in this configuration)
    ctx_ref[...] = (jnp.dot(ctx_acc[...], wm_ref[...],
                            preferred_element_type=f32) + bm_ref[...])   # [bs, v_dim]


def attention_forward(dec_state, enc_feat, enc_len, params,
                      *, num_head, dim, v_dim, temperature):
    bs, ts, _ = enc_feat.shape
    ts_pad = ((ts + 127) // 128) * 128          # lane-dense attention output
    enc_flat = enc_feat.reshape(bs * ts, v_dim)

    # Fuse K / V projection weights (columns are independent -> bit-identical).
    wkv = jnp.concatenate([params['wk'], params['wv']], axis=1)
    bkv = jnp.concatenate([params['bk'], params['bv']], axis=1)
    len2d = enc_len.reshape(bs, 1).astype(jnp.int32)

    kernel = functools.partial(_attention_kernel, bs=bs, ts=ts, nh=num_head,
                               dim=dim, v_dim=v_dim,
                               inv_temp=float(1.0 / temperature))

    attn_pad, context = pl.pallas_call(
        kernel,
        out_shape=(jax.ShapeDtypeStruct((num_head, bs, ts_pad), jnp.float32),
                   jax.ShapeDtypeStruct((bs, v_dim), jnp.float32)),
        in_specs=[pl.BlockSpec(memory_space=pltpu.MemorySpace.VMEM)] * 9,
        out_specs=(pl.BlockSpec(memory_space=pltpu.MemorySpace.VMEM),
                   pl.BlockSpec(memory_space=pltpu.MemorySpace.VMEM)),
        scratch_shapes=[pltpu.VMEM((bs, num_head * v_dim), jnp.float32)],
    )(len2d, dec_state, enc_flat,
      params['wq'], params['bq'], wkv, bkv, params['wm'], params['bm'])

    # Undo the lane padding / head-major layout outside the kernel.
    attn = jnp.transpose(attn_pad, (1, 0, 2))[:, :, :ts]
    return attn, context


def init_params(key, *, q_dim, v_dim, dim, num_head):
    """Deterministic init mimicking torch.nn.Linear default (U(-1/sqrt(fan_in), ..))."""
    def linear(k, fan_in, fan_out):
        kw, kb = jax.random.split(k)
        bound = 1.0 / (fan_in ** 0.5)
        w = jax.random.uniform(kw, (fan_in, fan_out), jnp.float32, -bound, bound)
        b = jax.random.uniform(kb, (1, fan_out), jnp.float32, -bound, bound)
        return w, b

    kq, kk, kv, km = jax.random.split(key, 4)
    wq, bq = linear(kq, q_dim, dim * num_head)
    wk, bk = linear(kk, v_dim, dim * num_head)
    wv, bv = linear(kv, v_dim, v_dim * num_head)
    wm, bm = linear(km, v_dim * num_head, v_dim)
    return dict(wq=wq, bq=bq, wk=wk, bk=bk, wv=wv, bv=bv, wm=wm, bm=bm)


def reference_forward(dec_state, enc_feat, enc_len, params,
                      *, num_head, dim, v_dim, temperature):
    """Pure-JAX mirror of the PyTorch forward (mode='dot', v_proj=True)."""
    bs, ts, _ = enc_feat.shape
    x = enc_feat.reshape(bs * ts, v_dim)
    q = jnp.tanh(dec_state @ params['wq'] + params['bq'])
    k = jnp.tanh(x @ params['wk'] + params['bk']).reshape(bs, ts, num_head * dim)
    v = jnp.tanh(x @ params['wv'] + params['bv']).reshape(bs, ts, num_head * v_dim)

    attn_rows, ctx_rows = [], []
    for b in range(bs):
        head_ctx = []
        for h in range(num_head):
            qbh = q[b, h * dim:(h + 1) * dim]
            kbh = k[b, :, h * dim:(h + 1) * dim]
            vbh = v[b, :, h * v_dim:(h + 1) * v_dim]
            e = (kbh @ qbh) / temperature
            e = jnp.where(jnp.arange(ts) >= enc_len[b], -jnp.inf, e)
            a = jax.nn.softmax(e)
            attn_rows.append(a)
            head_ctx.append(a @ vbh)
        ctx_rows.append(jnp.concatenate(head_ctx))
    attn = jnp.stack(attn_rows).reshape(bs, num_head, ts)
    context = jnp.stack(ctx_rows) @ params['wm'] + params['bm']
    return attn, context


if __name__ == "__main__":
    # TODO(synk): only the 'dot' attention path is implemented; the 'loc'
    # (LocationAwareAttention Conv1d) branch and cross-step key/value caching
    # (reset_mem/set_mem) are decoder-loop state, not part of this kernel.
    bs, ts = 2, 8
    q_dim, v_dim, dim, num_head = 32, 16, 16, 2
    temperature = dim ** 0.5

    root = jax.random.PRNGKey(0)
    k_param, k_dec, k_enc = jax.random.split(root, 3)
    params = init_params(k_param, q_dim=q_dim, v_dim=v_dim, dim=dim,
                         num_head=num_head)

    dec_state = jax.random.normal(k_dec, (bs, q_dim), jnp.float32)
    enc_feat = jax.random.normal(k_enc, (bs, ts, v_dim), jnp.float32)
    enc_len = jnp.array([ts, ts - 3], dtype=jnp.int32)

    attn, context = attention_forward(dec_state, enc_feat, enc_len, params,
                                      num_head=num_head, dim=dim, v_dim=v_dim,
                                      temperature=temperature)
    jax.block_until_ready((attn, context))

    ref_attn, ref_ctx = reference_forward(dec_state, enc_feat, enc_len, params,
                                          num_head=num_head, dim=dim,
                                          v_dim=v_dim, temperature=temperature)
    assert attn.shape == (bs, num_head, ts)
    assert context.shape == (bs, v_dim)
    # 1e-4 tolerance: approx-EUP reciprocal (+1 Newton step) and VPU-reduce vs
    # MXU-dot accumulation order differ slightly from the pure-JAX reference.
    assert jnp.allclose(attn, ref_attn, atol=1e-4, rtol=1e-4)
    assert jnp.allclose(context, ref_ctx, atol=1e-4, rtol=1e-4)

    print("KERNEL_OK")
</pallas_src>

<mosaic_0001>
module attributes {stable_mosaic.version = 11 : i64} {
  func.func @_attention_kernel(%arg0: memref<2x1xi32, #tpu.memory_space<vmem>>, %arg1: memref<2x32xf32, #tpu.memory_space<vmem>>, %arg2: memref<16x16xf32, #tpu.memory_space<vmem>>, %arg3: memref<32x32xf32, #tpu.memory_space<vmem>>, %arg4: memref<1x32xf32, #tpu.memory_space<vmem>>, %arg5: memref<16x64xf32, #tpu.memory_space<vmem>>, %arg6: memref<1x64xf32, #tpu.memory_space<vmem>>, %arg7: memref<32x16xf32, #tpu.memory_space<vmem>>, %arg8: memref<1x16xf32, #tpu.memory_space<vmem>>, %arg9: memref<2x2x128xf32, #tpu.memory_space<vmem>>, %arg10: memref<2x16xf32, #tpu.memory_space<vmem>>, %arg11: memref<2x32xf32, #tpu.memory_space<vmem>>) attributes {dimension_semantics = [], scalar_prefetch = 0 : i64, scratch_operands = 1 : i64, tpu.core_type = #tpu.core_type<tc>} {
    %c0 = arith.constant 0 : index
    %c0_0 = arith.constant 0 : index
    %0 = vector.load %arg1[%c0, %c0_0] : memref<2x32xf32, #tpu.memory_space<vmem>>, vector<2x32xf32>
    %c0_1 = arith.constant 0 : index
    %c0_2 = arith.constant 0 : index
    %1 = vector.load %arg3[%c0_1, %c0_2] : memref<32x32xf32, #tpu.memory_space<vmem>>, vector<32x32xf32>
    %cst = arith.constant dense<0.000000e+00> : vector<2x32xf32>
    %2 = tpu.matmul %0, %1, %cst {dimension_numbers = #tpu.dot_dimension_numbers<[1], [0], [0], [1], [0, 0, 1, 1], [], []>} : vector<2x32xf32>, vector<32x32xf32>, vector<2x32xf32> -> vector<2x32xf32>
    %c0_3 = arith.constant 0 : index
    %c0_4 = arith.constant 0 : index
    %3 = vector.load %arg4[%c0_3, %c0_4] : memref<1x32xf32, #tpu.memory_space<vmem>>, vector<1x32xf32>
    %4 = vector.broadcast %3 : vector<1x32xf32> to vector<2x32xf32>
    %5 = arith.addf %2, %4 : vector<2x32xf32>
    %6 = math.tanh %5 : vector<2x32xf32>
    %c0_5 = arith.constant 0 : index
    %c0_6 = arith.constant 0 : index
    %7 = vector.load %arg2[%c0_5, %c0_6] : memref<16x16xf32, #tpu.memory_space<vmem>>, vector<16x16xf32>
    %c0_7 = arith.constant 0 : index
    %c0_8 = arith.constant 0 : index
    %8 = vector.load %arg5[%c0_7, %c0_8] : memref<16x64xf32, #tpu.memory_space<vmem>>, vector<16x64xf32>
    %cst_9 = arith.constant dense<0.000000e+00> : vector<16x64xf32>
    %9 = tpu.matmul %7, %8, %cst_9 {dimension_numbers = #tpu.dot_dimension_numbers<[1], [0], [0], [1], [0, 0, 1, 1], [], []>} : vector<16x16xf32>, vector<16x64xf32>, vector<16x64xf32> -> vector<16x64xf32>
    %c0_10 = arith.constant 0 : index
    %c0_11 = arith.constant 0 : index
    %10 = vector.load %arg6[%c0_10, %c0_11] : memref<1x64xf32, #tpu.memory_space<vmem>>, vector<1x64xf32>
    %11 = vector.broadcast %10 : vector<1x64xf32> to vector<16x64xf32>
    %12 = arith.addf %9, %11 : vector<16x64xf32>
    %13 = math.tanh %12 : vector<16x64xf32>
    %14 = vector.extract_strided_slice %13 {offsets = [0, 0], sizes = [16, 32], strides = [1, 1]} : vector<16x64xf32> to vector<16x32xf32>
    %15 = vector.shape_cast %14 : vector<16x32xf32> to vector<2x8x32xf32>
    %16 = vector.extract_strided_slice %13 {offsets = [0, 32], sizes = [16, 32], strides = [1, 1]} : vector<16x64xf32> to vector<16x32xf32>
    %17 = vector.shape_cast %16 : vector<16x32xf32> to vector<2x8x32xf32>
    %18 = tpu.iota {dimensions = array<i32: 1>} : vector<2x8xi32>
    %c0_12 = arith.constant 0 : index
    %c0_13 = arith.constant 0 : index
    %19 = vector.load %arg0[%c0_12, %c0_13] : memref<2x1xi32, #tpu.memory_space<vmem>>, vector<2x1xi32>
    %20 = vector.broadcast %19 : vector<2x1xi32> to vector<2x8xi32>
    %21 = arith.cmpi sge, %18, %20 : vector<2x8xi32>
    %cst_14 = arith.constant 0xFF800000 : f32
    %cst_15 = arith.constant 0.000000e+00 : f32
    %22 = vector.broadcast %cst_14 : f32 to vector<2x8xf32>
    %23 = vector.broadcast %cst_15 : f32 to vector<2x8xf32>
    %24 = arith.select %21, %22, %23 : vector<2x8xi1>, vector<2x8xf32>
    %cst_16 = arith.constant 0.000000e+00 : f32
    %25 = vector.broadcast %cst_16 : f32 to vector<2x2x128xf32>
    %c0_17 = arith.constant 0 : index
    %c0_18 = arith.constant 0 : index
    %c0_19 = arith.constant 0 : index
    %26 = vector.load %arg9[%c0_17, %c0_18, %c0_19] : memref<2x2x128xf32, #tpu.memory_space<vmem>>, vector<2x2x128xf32>
    tpu.vector_store %arg9[%c0_17, %c0_18, %c0_19], %25 {strides = array<i32>} : memref<2x2x128xf32, #tpu.memory_space<vmem>>, vector<2x2x128xf32>,
    %27 = vector.extract_strided_slice %6 {offsets = [0, 0], sizes = [2, 16], strides = [1, 1]} : vector<2x32xf32> to vector<2x16xf32>
    %28 = vector.extract_strided_slice %15 {offsets = [0, 0, 0], sizes = [2, 8, 16], strides = [1, 1, 1]} : vector<2x8x32xf32> to vector<2x8x16xf32>
    %29 = vector.extract_strided_slice %17 {offsets = [0, 0, 0], sizes = [2, 8, 16], strides = [1, 1, 1]} : vector<2x8x32xf32> to vector<2x8x16xf32>
    %30 = vector.shape_cast %27 : vector<2x16xf32> to vector<2x1x16xf32>
    %31 = vector.broadcast %30 : vector<2x1x16xf32> to vector<2x8x16xf32>
    %32 = arith.mulf %28, %31 : vector<2x8x16xf32>
    %cst_20 = arith.constant dense<0.000000e+00> : vector<2x8xf32>
    %33 = vector.multi_reduction <add>, %32, %cst_20 [2] : vector<2x8x16xf32> to vector<2x8xf32>
    %cst_21 = arith.constant 2.500000e-01 : f32
    %34 = vector.broadcast %cst_21 : f32 to vector<2x8xf32>
    %35 = arith.mulf %33, %34 : vector<2x8xf32>
    %36 = arith.addf %35, %24 : vector<2x8xf32>
    %cst_22 = arith.constant dense<0xFF800000> : vector<2xf32>
    %37 = vector.multi_reduction <maximumf>, %36, %cst_22 [1] : vector<2x8xf32> to vector<2xf32>
    %38 = vector.shape_cast %37 : vector<2xf32> to vector<2x1xf32>
    %39 = vector.broadcast %38 : vector<2x1xf32> to vector<2x8xf32>
    %40 = arith.subf %36, %39 : vector<2x8xf32>
    %41 = math.exp %40 : vector<2x8xf32>
    %cst_23 = arith.constant dense<0.000000e+00> : vector<2xf32>
    %42 = vector.multi_reduction <add>, %41, %cst_23 [1] : vector<2x8xf32> to vector<2xf32>
    %43 = vector.shape_cast %42 : vector<2xf32> to vector<2x1xf32>
    %44 = tpu.reciprocal %43 {approx = true} : vector<2x1xf32> -> vector<2x1xf32>
    %45 = arith.mulf %43, %44 : vector<2x1xf32>
    %cst_24 = arith.constant 2.000000e+00 : f32
    %46 = vector.broadcast %cst_24 : f32 to vector<2x1xf32>
    %47 = arith.subf %46, %45 : vector<2x1xf32>
    %48 = arith.mulf %44, %47 : vector<2x1xf32>
    %49 = vector.broadcast %48 : vector<2x1xf32> to vector<2x8xf32>
    %50 = arith.mulf %41, %49 : vector<2x8xf32>
    %c0_25 = arith.constant 0 : index
    %c0_26 = arith.constant 0 : index
    %c0_27 = arith.constant 0 : index
    %51 = vector.load %arg9[%c0_25, %c0_26, %c0_27] : memref<2x2x128xf32, #tpu.memory_space<vmem>>, vector<1x2x8xf32>
    %52 = vector.shape_cast %51 : vector<1x2x8xf32> to vector<2x8xf32>
    %53 = vector.shape_cast %50 : vector<2x8xf32> to vector<1x2x8xf32>
    tpu.vector_store %arg9[%c0_25, %c0_26, %c0_27], %53 {strides = array<i32>} : memref<2x2x128xf32, #tpu.memory_space<vmem>>, vector<1x2x8xf32>,
    %54 = vector.shape_cast %50 : vector<2x8xf32> to vector<2x8x1xf32>
    %55 = vector.broadcast %54 : vector<2x8x1xf32> to vector<2x8x16xf32>
    %56 = arith.mulf %55, %29 : vector<2x8x16xf32>
    %cst_28 = arith.constant dense<0.000000e+00> : vector<2x16xf32>
    %57 = vector.multi_reduction <add>, %56, %cst_28 [1] : vector<2x8x16xf32> to vector<2x16xf32>
    %c0_29 = arith.constant 0 : index
    %c0_30 = arith.constant 0 : index
    %58 = vector.load %arg11[%c0_29, %c0_30] : memref<2x32xf32, #tpu.memory_space<vmem>>, vector<2x16xf32>
    tpu.vector_store %arg11[%c0_29, %c0_30], %57 {strides = array<i32>} : memref<2x32xf32, #tpu.memory_space<vmem>>, vector<2x16xf32>,
    %59 = vector.extract_strided_slice %6 {offsets = [0, 16], sizes = [2, 16], strides = [1, 1]} : vector<2x32xf32> to vector<2x16xf32>
    %60 = vector.extract_strided_slice %15 {offsets = [0, 0, 16], sizes = [2, 8, 16], strides = [1, 1, 1]} : vector<2x8x32xf32> to vector<2x8x16xf32>
    %61 = vector.extract_strided_slice %17 {offsets = [0, 0, 16], sizes = [2, 8, 16], strides = [1, 1, 1]} : vector<2x8x32xf32> to vector<2x8x16xf32>
    %62 = vector.shape_cast %59 : vector<2x16xf32> to vector<2x1x16xf32>
    %63 = vector.broadcast %62 : vector<2x1x16xf32> to vector<2x8x16xf32>
    %64 = arith.mulf %60, %63 : vector<2x8x16xf32>
    %cst_31 = arith.constant dense<0.000000e+00> : vector<2x8xf32>
    %65 = vector.multi_reduction <add>, %64, %cst_31 [2] : vector<2x8x16xf32> to vector<2x8xf32>
    %cst_32 = arith.constant 2.500000e-01 : f32
    %66 = vector.broadcast %cst_32 : f32 to vector<2x8xf32>
    %67 = arith.mulf %65, %66 : vector<2x8xf32>
    %68 = arith.addf %67, %24 : vector<2x8xf32>
    %cst_33 = arith.constant dense<0xFF800000> : vector<2xf32>
    %69 = vector.multi_reduction <maximumf>, %68, %cst_33 [1] : vector<2x8xf32> to vector<2xf32>
    %70 = vector.shape_cast %69 : vector<2xf32> to vector<2x1xf32>
    %71 = vector.broadcast %70 : vector<2x1xf32> to vector<2x8xf32>
    %72 = arith.subf %68, %71 : vector<2x8xf32>
    %73 = math.exp %72 : vector<2x8xf32>
    %cst_34 = arith.constant dense<0.000000e+00> : vector<2xf32>
    %74 = vector.multi_reduction <add>, %73, %cst_34 [1] : vector<2x8xf32> to vector<2xf32>
    %75 = vector.shape_cast %74 : vector<2xf32> to vector<2x1xf32>
    %76 = tpu.reciprocal %75 {approx = true} : vector<2x1xf32> -> vector<2x1xf32>
    %77 = arith.mulf %75, %76 : vector<2x1xf32>
    %cst_35 = arith.constant 2.000000e+00 : f32
    %78 = vector.broadcast %cst_35 : f32 to vector<2x1xf32>
    %79 = arith.subf %78, %77 : vector<2x1xf32>
    %80 = arith.mulf %76, %79 : vector<2x1xf32>
    %81 = vector.broadcast %80 : vector<2x1xf32> to vector<2x8xf32>
    %82 = arith.mulf %73, %81 : vector<2x8xf32>
    %c1 = arith.constant 1 : index
    %c0_36 = arith.constant 0 : index
    %c0_37 = arith.constant 0 : index
    %83 = vector.load %arg9[%c1, %c0_36, %c0_37] : memref<2x2x128xf32, #tpu.memory_space<vmem>>, vector<1x2x8xf32>
    %84 = vector.shape_cast %83 : vector<1x2x8xf32> to vector<2x8xf32>
    %85 = vector.shape_cast %82 : vector<2x8xf32> to vector<1x2x8xf32>
    tpu.vector_store %arg9[%c1, %c0_36, %c0_37], %85 {strides = array<i32>} : memref<2x2x128xf32, #tpu.memory_space<vmem>>, vector<1x2x8xf32>,
    %86 = vector.shape_cast %82 : vector<2x8xf32> to vector<2x8x1xf32>
    %87 = vector.broadcast %86 : vector<2x8x1xf32> to vector<2x8x16xf32>
    %88 = arith.mulf %87, %61 : vector<2x8x16xf32>
    %cst_38 = arith.constant dense<0.000000e+00> : vector<2x16xf32>
    %89 = vector.multi_reduction <add>, %88, %cst_38 [1] : vector<2x8x16xf32> to vector<2x16xf32>
    %c0_39 = arith.constant 0 : index
    %c16 = arith.constant 16 : index
    %90 = vector.load %arg11[%c0_39, %c16] : memref<2x32xf32, #tpu.memory_space<vmem>>, vector<2x16xf32>
    tpu.vector_store %arg11[%c0_39, %c16], %89 {strides = array<i32>} : memref<2x32xf32, #tpu.memory_space<vmem>>, vector<2x16xf32>,
    %c0_40 = arith.constant 0 : index
    %c0_41 = arith.constant 0 : index
    %91 = vector.load %arg11[%c0_40, %c0_41] : memref<2x32xf32, #tpu.memory_space<vmem>>, vector<2x32xf32>
    %c0_42 = arith.constant 0 : index
    %c0_43 = arith.constant 0 : index
    %92 = vector.load %arg7[%c0_42, %c0_43] : memref<32x16xf32, #tpu.memory_space<vmem>>, vector<32x16xf32>
    %cst_44 = arith.constant dense<0.000000e+00> : vector<2x16xf32>
    %93 = tpu.matmul %91, %92, %cst_44 {dimension_numbers = #tpu.dot_dimension_numbers<[1], [0], [0], [1], [0, 0, 1, 1], [], []>} : vector<2x32xf32>, vector<32x16xf32>, vector<2x16xf32> -> vector<2x16xf32>
    %c0_45 = arith.constant 0 : index
    %c0_46 = arith.constant 0 : index
    %94 = vector.load %arg8[%c0_45, %c0_46] : memref<1x16xf32, #tpu.memory_space<vmem>>, vector<1x16xf32>
    %95 = vector.broadcast %94 : vector<1x16xf32> to vector<2x16xf32>
    %96 = arith.addf %93, %95 : vector<2x16xf32>
    %c0_47 = arith.constant 0 : index
    %c0_48 = arith.constant 0 : index
    %97 = vector.load %arg10[%c0_47, %c0_48] : memref<2x16xf32, #tpu.memory_space<vmem>>, vector<2x16xf32>
    tpu.vector_store %arg10[%c0_47, %c0_48], %96 {strides = array<i32>} : memref<2x16xf32, #tpu.memory_space<vmem>>, vector<2x16xf32>,
    return
  }
}

</mosaic_0001>

<llo_original>
// kernel: tpu_custom_call.1
$region0: #{tpu_custom_call.1}
  #allocation0 [shape = 'u32[]', space=smem, size = 0x4, offset = 0x4, fixed_abs, tag = 'smem constant byte address 0x4 - core index']
  #allocation1 [shape = 'u32[72,128]{1,0:T(1,128)}', space=vmem, size = 0x9000, scoped, tag = 'internal scratch']
  #allocation2 [shape = 'f32[2,32]{1,0:T(2,128)}', space=vmem, size = 0x400, scoped, tag = 'scratch operand']
  %s0 = inlined_call_operand.vmem [shape: s32[2,1], index: 0, kind: input, shape index: {}]
  %s1 = inlined_call_operand.vmem [shape: f32[2,32], index: 1, kind: input, shape index: {}]
  %s2 = inlined_call_operand.vmem [shape: f32[16,16], index: 2, kind: input, shape index: {}]
  %s3 = inlined_call_operand.vmem [shape: f32[32,32], index: 3, kind: input, shape index: {}]
  %s4 = inlined_call_operand.vmem [shape: f32[1,32], index: 4, kind: input, shape index: {}]
  %s5 = inlined_call_operand.hbm [shape: f32[16,64], index: 5, kind: input, shape index: {}]
  %s6 = inlined_call_operand.vmem [shape: f32[1,64], index: 6, kind: input, shape index: {}]
  %s7 = inlined_call_operand.vmem [shape: f32[32,16], index: 7, kind: input, shape index: {}]
  %s8 = inlined_call_operand.vmem [shape: f32[1,16], index: 8, kind: input, shape index: {}]
  %s9 = inlined_call_operand.hbm [shape: f32[2,2,128], index: 9, kind: output, shape index: {0}]
  %s10 = inlined_call_operand.hbm [shape: f32[2,16], index: 10, kind: output, shape index: {1}]
  %11 = xla_tuple %s9, %s10
  %s12 = sld [smem:[#allocation0]]
  $region58: #{tpu_custom_call.1} parent=0
    _
  %s14 = ssub.s32 1, %s12
  %s15 = scalar_select 0, %s14, %s12
  $region1: #{tpu_custom_call.1} parent=0
    #allocation3 [shape = 'u8[8192]{0}', space=vmem, size = 0x2000, scoped, tag = 'input window, operand 5, single buffered']
    #allocation4 [shape = 's32[1]{0}', space=sflag, size = 0x4, scoped, tag = 'scoped memory for tpu_custom_call.1']
    #allocation5 [shape = 's32[1]{0}', space=sflag, size = 0x4, scoped, tag = 'scoped memory for tpu_custom_call.1']
    #allocation6 [shape = 'u8[2048]{0}', space=vmem, size = 0x800, scoped, tag = 'output window, operand 0, single buffered']
    #allocation7 [shape = 'u8[1024]{0}', space=vmem, size = 0x400, scoped, tag = 'output window, operand 1, single buffered']
    #allocation8 [shape = 's32[1]{0}', space=sflag, size = 0x4, scoped, tag = 'scoped memory for tpu_custom_call.1']
    %16 = vsyncpa [#allocation4], 0
    %17 = vsyncpa [#allocation5], 0
    %18 = vsyncpa [#allocation8], 0
    // Predicated region
    $region2: #{tpu_custom_call.1} parent=1 // pred_check
      _
    $region3: #{tpu_custom_call.1} parent=1 // pred_check_branch
      %20 = sbr.rel (0) target = $region5
    $region4: #{tpu_custom_call.1} parent=1 // pred_region
      _
    $region5: #{tpu_custom_call.1} parent=1 // pred_fallthru
      _
    // Predicated region
    $region6: #{tpu_custom_call.1} parent=1 // pred_check
      _
    $region7: #{tpu_custom_call.1} parent=1 // pred_check_branch
      %22 = sbr.rel (0) target = $region9
    $region8: #{tpu_custom_call.1} parent=1 // pred_region
      _
    $region9: #{tpu_custom_call.1} parent=1 // pred_fallthru
      _
    // Predicated region
    $region10: #{tpu_custom_call.1} parent=1 // pred_check
      _
    $region11: #{tpu_custom_call.1} parent=1 // pred_check_branch
      %24 = sbr.rel (0) target = $region13
    $region12: #{tpu_custom_call.1} parent=1 // pred_region
      _
    $region13: #{tpu_custom_call.1} parent=1 // pred_fallthru
      _
    // Predicated region
    $region14: #{tpu_custom_call.1} parent=1 // pred_check
      _
    $region15: #{tpu_custom_call.1} parent=1 // pred_check_branch
      %26 = sbr.rel (0) target = $region17
    $region16: #{tpu_custom_call.1} parent=1 // pred_region
      _
    $region17: #{tpu_custom_call.1} parent=1 // pred_fallthru
      _
    // Predicated region
    $region18: #{tpu_custom_call.1} parent=1 // pred_check
      _
    $region19: #{tpu_custom_call.1} parent=1 // pred_check_branch
      %28 = sbr.rel (0) target = $region21
    $region20: #{tpu_custom_call.1} parent=1 // pred_region
      _
    $region21: #{tpu_custom_call.1} parent=1 // pred_fallthru
      _
    // Predicated region
    $region22: #{tpu_custom_call.1} parent=1 // pred_check
      _
    $region23: #{tpu_custom_call.1} parent=1 // pred_check_branch
      %30 = sbr.rel (0) target = $region25
    $region24: #{tpu_custom_call.1} parent=1 // pred_region
      %32 = vsyncadd [#allocation4], 0
      %s33 = sshll.u32 %s5, 4
      %s34 = int_to_ptr.hbm [resolvable:$true] %s33
      %s35 = sshll.u32 [#allocation3], 4
      %s36 = int_to_ptr.vmem [resolvable:$true] %s35
      %41 = dma.hbm_to_vmem [thread:$0]  %s34, 256, %s36, [#allocation4], 128, 128, 8
    $region25: #{tpu_custom_call.1} parent=1 // pred_fallthru
      _
    // Predicated region
    $region26: #{tpu_custom_call.1} parent=1 // pred_check
      _
    $region27: #{tpu_custom_call.1} parent=1 // pred_check_branch
      %43 = sbr.rel (0) target = $region29
    $region28: #{tpu_custom_call.1} parent=1 // pred_region
      _
    $region29: #{tpu_custom_call.1} parent=1 // pred_fallthru
      _
    // Predicated region
    $region30: #{tpu_custom_call.1} parent=1 // pred_check
      _
    $region31: #{tpu_custom_call.1} parent=1 // pred_check_branch
      %45 = sbr.rel (0) target = $region33
    $region32: #{tpu_custom_call.1} parent=1 // pred_region
      _
    $region33: #{tpu_custom_call.1} parent=1 // pred_fallthru
      _
    // Predicated region
    $region34: #{tpu_custom_call.1} parent=1 // pred_check
      _
    $region35: #{tpu_custom_call.1} parent=1 // pred_check_branch
      %47 = sbr.rel (0) target = $region37
    $region36: #{tpu_custom_call.1} parent=1 // pred_region
      _
    $region37: #{tpu_custom_call.1} parent=1 // pred_fallthru
      _
    // Predicated region
    $region38: #{tpu_custom_call.1} parent=1 // pred_check
      _
    $region39: #{tpu_custom_call.1} parent=1 // pred_check_branch
      %49 = sbr.rel (0) target = $region41
    $region40: #{tpu_custom_call.1} parent=1 // pred_region
      %51 = dma.done [#allocation4], 256
    $region41: #{tpu_custom_call.1} parent=1 // pred_fallthru
      _
    %v52 = vld [vmem:[%s1] sm:$0x3]
    %v53 = vld [vmem:[%s3] sm:$0xff]
    %v54 = vld [vmem:[%s3 + $0x8] sm:$0xff]
    %v55 = vld [vmem:[%s3 + $0x10] sm:$0xff]
    %v56 = vld [vmem:[%s3 + $0x18] sm:$0xff]
    %v57 = vld [vmem:[%s4] sm:$0x1]
    %v59 = vperm.slane %v57, 0
    %vm61 = vcmask 261120
    %v63 = vsel %vm61, %v52, 0
    %65 = vmatpush.msra.mxu0 0.0
    %66 = vmatpush.msra.mxu0 0.0
    %67 = vmatpush.msra.mxu0 0.0
    %68 = vmatpush.msra.mxu0 0.0
    %69 = vmatpush.msra.mxu0 0.0
    %70 = vmatpush.msra.mxu0 0.0
    %71 = vmatpush.msra.mxu0 0.0
    %72 = vmatpush.msra.mxu0 0.0
    %73 = vmatpush.msra.mxu0 0.0
    %74 = vmatpush.msra.mxu0 0.0
    %75 = vmatpush.msra.mxu0 0.0
    %76 = vmatpush.msra.mxu0 0.0
    %77 = vmatpush.msra.mxu0 %v56
    %78 = vmatpush.msra.mxu0 %v55
    %79 = vmatpush.msra.mxu0 %v54
    %80 = vmatpush.msra.mxu0 %v53
    %81 = vmatmul.f32.gmra.mxu0 %v63
    %v82 = vpop.f32.mrf.mxu0
    %v83 = vadd.f32 %v59, %v82
    %84 = vdwg.mxu0
    %v85 = vtanh.pop %v83
    %v86 = vld [vmem:[%s2] sm:$0xff]
    %v87 = vld [vmem:[%s2 + $0x8] sm:$0xff]
    %v88 = vld [vmem:[#allocation3] sm:$0xff]
    %v89 = vld [vmem:[#allocation3 + $0x8] sm:$0xff]
    %v90 = vld [vmem:[%s6] sm:$0x1]
    %v92 = vperm.slane %v90, 0
    %vm94 = vcmask 130048
    %v96 = vsel %vm94, %v86, 0
    %v99 = vsel %vm94, %v87, 0
    %101 = vmatpush.msra.mxu0 0.0
    %102 = vmatpush.msra.mxu0 0.0
    %103 = vmatpush.msra.mxu0 0.0
    %104 = vmatpush.msra.mxu0 0.0
    %105 = vmatpush.msra.mxu0 0.0
    %106 = vmatpush.msra.mxu0 0.0
    %107 = vmatpush.msra.mxu0 0.0
    %108 = vmatpush.msra.mxu0 0.0
    %109 = vmatpush.msra.mxu0 0.0
    %110 = vmatpush.msra.mxu0 0.0
    %111 = vmatpush.msra.mxu0 0.0
    %112 = vmatpush.msra.mxu0 0.0
    %113 = vmatpush.msra.mxu0 0.0
    %114 = vmatpush.msra.mxu0 0.0
    %115 = vmatpush.msra.mxu0 %v89
    %116 = vmatpush.msra.mxu0 %v88
    %117 = vmatmul.f32.gmra.mxu0 %v96
    %v118 = vpop.f32.mrf.mxu0
    %v119 = vadd.f32 %v92, %v118
    %120 = vmatmul.f32.gmra.mxu0 %v99
    %v121 = vpop.f32.mrf.mxu0
    %v122 = vadd.f32 %v92, %v121
    %123 = vdwg.mxu0
    %v124 = vtanh.pop %v119
    %v125 = vtanh.pop %v122
    %v126 = vlaneseq
    %v127 = vand.u32 %v126, 127
    %v128 = vld [vmem:[%s0] sm:$0x3]
    %129 = vset.pattern.permute.xlu0 0
    %130 = vperm.xlu0 %129, %v128
    %v131 = vpop.permute.xlu0 %130
    %vm132 = vcmp.ge.s32.totalorder %v127, %v131
    %v133 = vsel %vm132, -inf, 0.0
    %134 = vst [vmem:[#allocation6] sm:$0x3] 0.0
    %135 = vst [vmem:[#allocation6 + $0x2] sm:$0x3] 0.0
    %v137 = vrot.slane %v85, 1
    %v138 = vperm.slane %v85, 0
    %v139 = vperm.slane %v137, 0
    %v142 = vmul.f32 %v124, %v138
    %v143 = vmul.f32 %v125, %v139
    %v144 = vsel %vm94, %v142, 0.0
    %145 = vadd.xlane.f32.xlu0 %v144
    %v146 = vpop.xlane.xlu0 %145
    %v147 = vsel %vm94, %v143, 0.0
    %148 = vadd.xlane.f32.xlu0 %v147
    %v149 = vpop.xlane.xlu0 %148
    %v150 = vmul.f32 %v146, 0.25
    %v151 = vmul.f32 %v149, 0.25
    %v153 = vperm.slane %v133, 0
    %v154 = vlaneseq
    %v155 = vshrl.u32 %v154, 7
    %157 = vset.pattern.permute.xlu0 %v155
    %158 = vperm.xlu0 %157, %v153
    %v159 = vpop.permute.xlu0 %158
    %v160 = vperm.slane %v133, 1
    %v161 = vlaneseq
    %v162 = vshrl.u32 %v161, 7
    %164 = vset.pattern.permute.xlu0 %v162
    %165 = vperm.xlu0 %164, %v160
    %v166 = vpop.permute.xlu0 %165
    %v169 = vadd.f32 %v150, %v159
    %v170 = vadd.f32 %v151, %v166
    %173 = vset.pattern.permute.xlu0 0
    %174 = vperm.xlu0 %173, %v169
    %v175 = vpop.permute.xlu0 %174
    %176 = vset.pattern.permute.xlu0 0
    %177 = vperm.xlu0 %176, %v170
    %v178 = vpop.permute.xlu0 %177
    %v179 = vperm.slane %v175, %v127
    %v180 = vperm.slane %v178, %v127
    %vm181 = vcmask 1041409
    %v182 = vsel %vm181, %v180, %v179
    %vm184 = vcmask 58368
    %v185 = vsel %vm184, %v182, -inf
    %186 = vmax.xlane.f32.xlu0 %v185
    %v187 = vpop.xlane.xlu0 %186
    %v189 = vperm.slane %v187, 0
    %v190 = vperm.slane %v187, 1
    %v193 = vsub.f32 %v169, %v189
    %v194 = vsub.f32 %v170, %v190
    %v195 = vmul.f32 %v193, 1.442695
    %v196 = vpow.pop %v195
    %v197 = vmul.f32 %v194, 1.442695
    %v198 = vpow.pop %v197
    %201 = vset.pattern.permute.xlu0 0
    %202 = vperm.xlu0 %201, %v196
    %v203 = vpop.permute.xlu0 %202
    %204 = vset.pattern.permute.xlu0 0
    %205 = vperm.xlu0 %204, %v198
    %v206 = vpop.permute.xlu0 %205
    %v207 = vperm.slane %v203, %v127
    %v208 = vperm.slane %v206, %v127
    %v209 = vsel %vm181, %v208, %v207
    %v211 = vsel %vm184, %v209, 0.0
    %212 = vadd.xlane.f32.xlu0 %v211
    %v213 = vpop.xlane.xlu0 %212
    %v214 = vrcp.pop %v213
    %v215 = vmul.f32 %v213, %v214
    %v216 = vsub.f32 2.0, %v215
    %v217 = vmul.f32 %v214, %v216
    %v219 = vperm.slane %v217, 0
    %v220 = vperm.slane %v217, 1
    %v223 = vmul.f32 %v196, %v219
    %v224 = vmul.f32 %v198, %v220
    %227 = vset.pattern.permute.xlu0 0
    %228 = vperm.xlu0 %227, %v223
    %v229 = vpop.permute.xlu0 %228
    %230 = vset.pattern.permute.xlu0 0
    %231 = vperm.xlu0 %230, %v224
    %v232 = vpop.permute.xlu0 %231
    %v233 = vperm.slane %v229, %v127
    %v234 = vperm.slane %v232, %v127
    %v235 = vsel %vm181, %v234, %v233
    %237 = vst.msk [vmem:[#allocation6] sm:$0x3] %vm184, %v235
    %v240 = vmul.f32 %v229, %v124
    %v241 = vmul.f32 %v232, %v125
    %vm242 = vcmask 392448
    %v243 = vsel %vm242, %v240, 0.0
    %v244 = vrot.slane %v243, 4
    %v245 = vadd.f32 %v243, %v244
    %v246 = vrot.slane %v245, 2
    %v247 = vadd.f32 %v245, %v246
    %v248 = vrot.slane %v247, 1
    %v249 = vadd.f32 %v247, %v248
    %v250 = vsel %vm242, %v241, 0.0
    %v251 = vrot.slane %v250, 4
    %v252 = vadd.f32 %v250, %v251
    %v253 = vrot.slane %v252, 2
    %v254 = vadd.f32 %v252, %v253
    %v255 = vrot.slane %v254, 1
    %v256 = vadd.f32 %v254, %v255
    %v259 = vsel %vm181, %v256, %v249
    %260 = vrot.lane.b32.xlu0 %v259, 96
    %v261 = vpop.permute.xlu0 %260
    %vm263 = vcmask 123904
    %264 = vst.msk [vmem:[#allocation2] sm:$0x3] %vm263, %v261
    %267 = vrot.lane.b32.xlu0 %v142, 112
    %v268 = vpop.permute.xlu0 %267
    %269 = vrot.lane.b32.xlu0 %v143, 112
    %v270 = vpop.permute.xlu0 %269
    %v273 = vsel %vm94, %v268, 0.0
    %274 = vadd.xlane.f32.xlu0 %v273
    %v275 = vpop.xlane.xlu0 %274
    %v276 = vsel %vm94, %v270, 0.0
    %277 = vadd.xlane.f32.xlu0 %v276
    %v278 = vpop.xlane.xlu0 %277
    %v279 = vmul.f32 %v275, 0.25
    %v280 = vmul.f32 %v278, 0.25
    %v281 = vadd.f32 %v279, %v159
    %v282 = vadd.f32 %v280, %v166
    %285 = vset.pattern.permute.xlu0 0
    %286 = vperm.xlu0 %285, %v281
    %v287 = vpop.permute.xlu0 %286
    %288 = vset.pattern.permute.xlu0 0
    %289 = vperm.xlu0 %288, %v282
    %v290 = vpop.permute.xlu0 %289
    %v291 = vperm.slane %v287, %v127
    %v292 = vperm.slane %v290, %v127
    %v293 = vsel %vm181, %v292, %v291
    %v295 = vsel %vm184, %v293, -inf
    %296 = vmax.xlane.f32.xlu0 %v295
    %v297 = vpop.xlane.xlu0 %296
    %v299 = vperm.slane %v297, 0
    %v300 = vperm.slane %v297, 1
    %v303 = vsub.f32 %v281, %v299
    %v304 = vsub.f32 %v282, %v300
    %v305 = vmul.f32 %v303, 1.442695
    %v306 = vpow.pop %v305
    %v307 = vmul.f32 %v304, 1.442695
    %v308 = vpow.pop %v307
    %311 = vset.pattern.permute.xlu0 0
    %312 = vperm.xlu0 %311, %v306
    %v313 = vpop.permute.xlu0 %312
    %314 = vset.pattern.permute.xlu0 0
    %315 = vperm.xlu0 %314, %v308
    %v316 = vpop.permute.xlu0 %315
    %v317 = vperm.slane %v313, %v127
    %v318 = vperm.slane %v316, %v127
    %v319 = vsel %vm181, %v318, %v317
    %v321 = vsel %vm184, %v319, 0.0
    %322 = vadd.xlane.f32.xlu0 %v321
    %v323 = vpop.xlane.xlu0 %322
    %v324 = vrcp.pop %v323
    %v325 = vmul.f32 %v323, %v324
    %v326 = vsub.f32 2.0, %v325
    %v327 = vmul.f32 %v324, %v326
    %v329 = vperm.slane %v327, 0
    %v330 = vperm.slane %v327, 1
    %v333 = vmul.f32 %v306, %v329
    %v334 = vmul.f32 %v308, %v330
    %337 = vset.pattern.permute.xlu0 0
    %338 = vperm.xlu0 %337, %v333
    %v339 = vpop.permute.xlu0 %338
    %340 = vset.pattern.permute.xlu0 0
    %341 = vperm.xlu0 %340, %v334
    %v342 = vpop.permute.xlu0 %341
    %v343 = vperm.slane %v339, %v127
    %v344 = vperm.slane %v342, %v127
    %v345 = vsel %vm181, %v344, %v343
    %s347 = scalar_lea.vmem [#allocation6], 2
    %348 = vst.msk [vmem:[%s347] sm:$0x3] %vm184, %v345
    %v351 = vmul.f32 %v339, %v124
    %v352 = vmul.f32 %v342, %v125
    %vm353 = vcmask 523648
    %v354 = vsel %vm353, %v351, 0.0
    %v355 = vrot.slane %v354, 4
    %v356 = vadd.f32 %v354, %v355
    %v357 = vrot.slane %v356, 2
    %v358 = vadd.f32 %v356, %v357
    %v359 = vrot.slane %v358, 1
    %v360 = vadd.f32 %v358, %v359
    %v361 = vsel %vm353, %v352, 0.0
    %v362 = vrot.slane %v361, 4
    %v363 = vadd.f32 %v361, %v362
    %v364 = vrot.slane %v363, 2
    %v365 = vadd.f32 %v363, %v364
    %v366 = vrot.slane %v365, 1
    %v367 = vadd.f32 %v365, %v366
    %v370 = vsel %vm181, %v367, %v360
    %371 = vrot.lane.b32.xlu0 %v370, 96
    %v372 = vpop.permute.xlu0 %371
    %vm374 = vcmask 255104
    %375 = vst.msk [vmem:[#allocation2] sm:$0x3] %vm374, %v372
    %v376 = vld [vmem:[#allocation2] sm:$0x3]
    %v377 = vld [vmem:[%s7] sm:$0xff]
    %v378 = vld [vmem:[%s7 + $0x8] sm:$0xff]
    %v379 = vld [vmem:[%s7 + $0x10] sm:$0xff]
    %v380 = vld [vmem:[%s7 + $0x18] sm:$0xff]
    %v381 = vld [vmem:[%s8] sm:$0x1]
    %v383 = vperm.slane %v381, 0
    %v386 = vsel %vm61, %v376, 0
    %388 = vmatpush.msra.mxu0 0.0
    %389 = vmatpush.msra.mxu0 0.0
    %390 = vmatpush.msra.mxu0 0.0
    %391 = vmatpush.msra.mxu0 0.0
    %392 = vmatpush.msra.mxu0 0.0
    %393 = vmatpush.msra.mxu0 0.0
    %394 = vmatpush.msra.mxu0 0.0
    %395 = vmatpush.msra.mxu0 0.0
    %396 = vmatpush.msra.mxu0 0.0
    %397 = vmatpush.msra.mxu0 0.0
    %398 = vmatpush.msra.mxu0 0.0
    %399 = vmatpush.msra.mxu0 0.0
    %400 = vmatpush.msra.mxu0 %v380
    %401 = vmatpush.msra.mxu0 %v379
    %402 = vmatpush.msra.mxu0 %v378
    %403 = vmatpush.msra.mxu0 %v377
    %404 = vmatmul.f32.gmra.mxu0 %v386
    %v405 = vpop.f32.mrf.mxu0
    %v406 = vadd.f32 %v383, %v405
    %407 = vdwg.mxu0
    %408 = vst.msk [vmem:[#allocation7] sm:$0x3] %vm263, %v406
    // Predicated region
    $region42: #{tpu_custom_call.1} parent=1 // pred_check
      _
    $region43: #{tpu_custom_call.1} parent=1 // pred_check_branch
      %410 = sbr.rel (0) target = $region45
    $region44: #{tpu_custom_call.1} parent=1 // pred_region
      %412 = vsyncadd [#allocation5], 0
      %s413 = sshll.u32 [#allocation6], 4
      %s414 = int_to_ptr.vmem [resolvable:$true] %s413
      %s415 = sshll.u32 %s9, 4
      %s416 = int_to_ptr.hbm [resolvable:$true] %s415
      %421 = dma.vmem_to_hbm [thread:$0]  %s414, 64, %s416, [#allocation5], 32, 32, 2
    $region45: #{tpu_custom_call.1} parent=1 // pred_fallthru
      _
    // Predicated region
    $region46: #{tpu_custom_call.1} parent=1 // pred_check
      _
    $region47: #{tpu_custom_call.1} parent=1 // pred_check_branch
      %423 = sbr.rel (0) target = $region49
    $region48: #{tpu_custom_call.1} parent=1 // pred_region
      %425 = vsyncadd [#allocation8], 0
      %s427 = sshll.u32 [#allocation7], 4
      %s428 = int_to_ptr.vmem [resolvable:$true] %s427
      %s429 = sshll.u32 %s10, 4
      %s430 = int_to_ptr.hbm [resolvable:$true] %s429
      %432 = dma.vmem_to_hbm [thread:$0]  %s428, 32, %s430, [#allocation8]
    $region49: #{tpu_custom_call.1} parent=1 // pred_fallthru
      _
    // Predicated region
    $region50: #{tpu_custom_call.1} parent=1 // pred_check
      _
    $region51: #{tpu_custom_call.1} parent=1 // pred_check_branch
      %434 = sbr.rel (0) target = $region53
    $region52: #{tpu_custom_call.1} parent=1 // pred_region
      %436 = dma.done [#allocation5], 64
    $region53: #{tpu_custom_call.1} parent=1 // pred_fallthru
      _
    // Predicated region
    $region54: #{tpu_custom_call.1} parent=1 // pred_check
      _
    $region55: #{tpu_custom_call.1} parent=1 // pred_check_branch
      %438 = sbr.rel (0) target = $region57
    $region56: #{tpu_custom_call.1} parent=1 // pred_region
      %440 = dma.done [#allocation8], 32
    $region57: #{tpu_custom_call.1} parent=1 // pred_fallthru
      _
    %441 = vsyncpa [#allocation4], 1
    %442 = vsyncpa [#allocation5], 1
    %443 = vsyncpa [#allocation8], 1

</llo_original>
